<compile_context>
chip_gen: v5e
topology: v5e:2x2
jax: 0.10.0
libtpu: 0.0.40
codegen_flags: <defaults>
</compile_context>

<pallas_src>
import functools
import math

import jax
import jax.numpy as jnp
import numpy as np
from jax.experimental import pallas as pl
from jax.experimental.pallas import tpu as pltpu


_KP = 128      # packed-center lane count (requires H + W <= 128)


def _round_up(x, m):
    return ((x + m - 1) // m) * m


def _choose_tile_n(total_rows):
    """Row-tile size: whole workload if tiny, else multiples of 128 with >=2
    grid steps (keeps both v7x TensorCores busy, fills the MXU M dim, and
    amortizes the ~0.35us per-step overhead)."""
    t8 = _round_up(max(total_rows, 1), 8)
    if t8 <= 128:
        return t8
    if t8 <= 512:
        return 128
    if t8 <= 2048:
        return 256
    return 512


def _image_kernel(sg_ref, pts_ref, cpack_ref, selh_ref, selw_ref, out_ref, *, H):
    # sg_ref    : SMEM (1,)           learned bandwidth sigma
    # pts_ref   : VMEM (TN, 2)        [birth, persistence] (padded rows are 0)
    # cpack_ref : VMEM (1, 128)       lanes 0..H-1: birth-axis centers,
    #                                 lanes H..H+W-1: persistence-axis centers
    # selh_ref  : VMEM (128, P_pad)   bf16 one-hot: sel[i,     i*W + j] = 1
    # selw_ref  : VMEM (128, P_pad)   bf16 one-hot: sel[H + j, i*W + j] = 1
    # out_ref   : VMEM (TN, P_pad)
    sg = sg_ref[0]
    sg2 = sg * sg
    # TODO(synk): like the PyTorch layer, sigma ~ 0 gives inf/NaN; no clamp here.
    inv_two_sg2 = 1.0 / (2.0 * sg2)        # scalar, hoisted
    norm = 1.0 / (2.0 * math.pi * sg2)     # scalar, hoisted

    pts = pts_ref[...]                     # (TN, 2) already [birth, death-birth]
    birth = pts[:, 0:1]                    # (TN, 1)
    pers = pts[:, 1:2]                     # (TN, 1)

    lane = jax.lax.broadcasted_iota(jnp.int32, (1, cpack_ref.shape[1]), 1)
    is_birth_lane = lane < H                                   # (1, 128)
    s = jnp.where(is_birth_lane, birth, pers)                  # (TN, 128)
    d = s - cpack_ref[...]                                     # (TN, 128)
    e = jnp.exp(d * d * (-inv_two_sg2))                        # ONE exp per point/lane
    e = e * jnp.where(is_birth_lane, 1.0, norm)                # fold norm into small array

    # Expand the separable factors to the flattened (TN, H*W) image via one-hot
    # selection matmuls on the MXU.  bf16 sel is exact (0/1); the hi/lo split
    # keeps the f32 operand to ~2^-17 relative error using plain DEFAULT
    # (single-pass bf16) matmuls instead of precision=HIGHEST.
    e_hi = e.astype(jnp.bfloat16)
    e_lo = (e - e_hi.astype(jnp.float32)).astype(jnp.bfloat16)
    selh = selh_ref[...]
    selw = selw_ref[...]
    a_img = (jnp.dot(e_hi, selh, preferred_element_type=jnp.float32) +
             jnp.dot(e_lo, selh, preferred_element_type=jnp.float32))
    b_img = (jnp.dot(e_hi, selw, preferred_element_type=jnp.float32) +
             jnp.dot(e_lo, selw, preferred_element_type=jnp.float32))
    out_ref[...] = a_img * b_img


def _constants(image_size, image_bnds, p_pad):
    """Packed pixel-center vector and bf16 one-hot expansion matrices."""
    H, W = image_size
    P = H * W
    cpack = np.zeros((1, _KP), np.float32)
    for ax, off in ((0, 0), (1, H)):
        sz = image_size[ax]
        lo, hi = image_bnds[ax]
        step = np.float32((hi - lo) / sz)
        cpack[0, off:off + sz] = np.float32(lo) + step * np.arange(sz, dtype=np.float32)

    p_idx = np.arange(p_pad)
    valid = p_idx < P
    big = 10 ** 6
    row = np.where(valid, p_idx // W, -big)     # i = p // W (row-major flatten)
    col = np.where(valid, p_idx % W, -big)      # j = p %  W
    k = np.arange(_KP)
    selh = (k[:, None] == row[None, :]).astype(np.float32)        # lanes 0..H-1
    selw = ((k[:, None] - H) == col[None, :]).astype(np.float32)  # lanes H..H+W-1
    return (jnp.asarray(cpack),
            jnp.asarray(selh, jnp.bfloat16),    # 0/1 exact in bf16
            jnp.asarray(selw, jnp.bfloat16))


def image_layer_packed(pd_points, sg,
                       image_size=(20, 20),
                       image_bnds=((-0.001, 1.001), (-0.001, 1.001))):
    """Runs the kernel once over the row-packed batch.

    Returns (out, offsets, ns, P): diagram b's image rows live at
    out[offsets[b] : offsets[b] + ns[b], :P]."""
    H, W = image_size
    P = H * W
    assert H + W <= _KP, "image_size must satisfy H + W <= 128"
    p_pad = _round_up(P, 128)                     # 400 -> 512: lane-dense stores

    ns = [int(p.shape[0]) for p in pd_points]
    ns_pad = [_round_up(n, 8) for n in ns]        # per-diagram sublane alignment
    offsets = []
    acc = 0
    for npad in ns_pad:
        offsets.append(acc)
        acc += npad
    total = acc
    tile_n = _choose_tile_n(total)
    total_pad = _round_up(max(total, tile_n), tile_n)

    # Pack the ragged batch; hoist the [birth, death-birth] transform here
    # (one XLA subtract over the whole packed batch).
    segs = [jnp.pad(jnp.asarray(p, jnp.float32).reshape(n, 2),
                    ((0, npad - n), (0, 0)))
            for p, n, npad in zip(pd_points, ns, ns_pad)]
    pts = (jnp.concatenate(segs, axis=0) if segs
           else jnp.zeros((0, 2), jnp.float32))
    pts = jnp.pad(pts, ((0, total_pad - total), (0, 0)))
    birth = pts[:, 0:1]
    pts_bp = jnp.concatenate([birth, pts[:, 1:2] - birth], axis=1)   # (R_pad, 2)

    cpack, selh, selw = _constants(image_size, image_bnds, p_pad)
    sg_arr = jnp.asarray(sg, jnp.float32).reshape(1)

    # VMEM at the largest tile (512 rows): out 2x1 MiB + bf16 sel 2x2x128 KiB
    # + pts ~8 KiB -> far below every generation's default scoped limit, so no
    # vmem_limit_bytes is needed.  (Constants could use pipeline_mode=Buffered(1)
    # to drop their redundant second buffer, but the savings are negligible.)
    out = pl.pallas_call(
        functools.partial(_image_kernel, H=H),
        out_shape=jax.ShapeDtypeStruct((total_pad, p_pad), jnp.float32),
        grid=(total_pad // tile_n,),
        in_specs=[
            pl.BlockSpec(memory_space=pltpu.MemorySpace.SMEM),       # sg (scalar)
            pl.BlockSpec((tile_n, 2), lambda i: (i, 0)),             # packed points tile
            pl.BlockSpec((1, _KP), lambda i: (0, 0)),                # packed centers (resident)
            pl.BlockSpec((_KP, p_pad), lambda i: (0, 0)),            # selh (resident)
            pl.BlockSpec((_KP, p_pad), lambda i: (0, 0)),            # selw (resident)
        ],
        out_specs=pl.BlockSpec((tile_n, p_pad), lambda i: (i, 0)),
        compiler_params=pltpu.CompilerParams(
            dimension_semantics=("parallel",)),
    )(sg_arr, pts_bp, cpack, selh, selw)
    return out, offsets, ns, P


def image_layer(pd_points, sg,
                image_size=(20, 20),
                image_bnds=((-0.001, 1.001), (-0.001, 1.001))):
    """Mirrors ImageLayer.forward: list of (N_b, 2) -> list of (N_b, H*W)."""
    out, offsets, ns, P = image_layer_packed(pd_points, sg, image_size, image_bnds)
    flat = out[:, :P]                    # single lane-padding slice (512 -> 400)
    # Per-diagram row slices are contiguous, statically-shaped views of the
    # packed result (padded rows never leak downstream).
    return [flat[off:off + n] for off, n in zip(offsets, ns)]


def _ref_forward_single(inp, sg, image_size, image_bnds):
    """Pure-JAX reference matching the PyTorch forward."""
    H, W = image_size
    x = inp[:, 0:1]
    y = inp[:, 1:2]
    bp = jnp.concatenate([x, y - x], axis=1)       # == inp @ [[1,-1],[0,1]]
    coords = [jnp.float32(image_bnds[i][0])
              + jnp.float32((image_bnds[i][1] - image_bnds[i][0]) / image_size[i])
              * jnp.arange(image_size[i], dtype=jnp.float32)
              for i in range(2)]
    M = jnp.meshgrid(coords[0], coords[1], indexing="ij")
    mu = jnp.stack(M, axis=0)                      # (2, H, W)
    bc = bp[:, :, None, None]                      # (N, 2, 1, 1)
    expo = -jnp.square(bc - mu) / (2.0 * jnp.square(sg))
    out = jnp.exp(jnp.sum(expo, axis=1)) / (2.0 * jnp.pi * jnp.square(sg))
    return out.reshape(-1, H * W)


if __name__ == "__main__":
    key = jax.random.PRNGKey(0)
    k_sg, k1, k2 = jax.random.split(key, 3)

    # nn.Parameter(torch.rand(1)) -> deterministic uniform in [0, 1)
    sg = jax.random.uniform(k_sg, (1,), dtype=jnp.float32)

    # pd_points: list of (N_b, 2) persistence diagrams (small, ragged shapes)
    pd_points = [
        jax.random.uniform(k1, (12, 2), dtype=jnp.float32),
        jax.random.uniform(k2, (7, 2), dtype=jnp.float32),
    ]

    vec = image_layer(pd_points, sg)
    vec = jax.block_until_ready(vec)

    # correctness check against a pure-JAX reference of the torch forward
    for out, inp in zip(vec, pd_points):
        ref = _ref_forward_single(inp, sg, (20, 20),
                                  ((-0.001, 1.001), (-0.001, 1.001)))
        assert out.shape == ref.shape
        assert jnp.allclose(out, ref, rtol=1e-4, atol=1e-6), "mismatch vs reference"

    print("KERNEL_OK")
</pallas_src>

<mosaic_0001>
module attributes {stable_mosaic.version = 11 : i64} {
  func.func @_image_kernel(%arg0: i32, %arg1: memref<1xf32, #tpu.memory_space<smem>>, %arg2: memref<24x2xf32, #tpu.memory_space<vmem>>, %arg3: memref<1x128xf32, #tpu.memory_space<vmem>>, %arg4: memref<128x512xbf16, #tpu.memory_space<vmem>>, %arg5: memref<128x512xbf16, #tpu.memory_space<vmem>>, %arg6: memref<24x512xf32, #tpu.memory_space<vmem>>) attributes {dimension_semantics = [#tpu.dimension_semantics<parallel>], iteration_bounds = array<i64: 1>, scalar_prefetch = 0 : i64, scratch_operands = 0 : i64, tpu.core_type = #tpu.core_type<tc>, window_params = [{transform_indices = @transform_0, window_bounds = array<i64: 1>}, {transform_indices = @transform_1, window_bounds = array<i64: 24, 2>}, {pipeline_mode = #tpu.pipeline_mode<synchronous>, transform_indices = @transform_2, window_bounds = array<i64: 1, 128>}, {pipeline_mode = #tpu.pipeline_mode<synchronous>, transform_indices = @transform_3, window_bounds = array<i64: 128, 512>}, {pipeline_mode = #tpu.pipeline_mode<synchronous>, transform_indices = @transform_4, window_bounds = array<i64: 128, 512>}, {transform_indices = @transform_5, window_bounds = array<i64: 24, 512>}]} {
    %c0 = arith.constant 0 : index
    %0 = memref.load %arg1[%c0] : memref<1xf32, #tpu.memory_space<smem>>
    %1 = arith.mulf %0, %0 : f32
    %cst = arith.constant 2.000000e+00 : f32
    %2 = arith.mulf %cst, %1 : f32
    %cst_0 = arith.constant 1.000000e+00 : f32
    %3 = arith.divf %cst_0, %2 : f32
    %cst_1 = arith.constant 6.28318548 : f32
    %4 = arith.mulf %cst_1, %1 : f32
    %cst_2 = arith.constant 1.000000e+00 : f32
    %5 = arith.divf %cst_2, %4 : f32
    %c0_3 = arith.constant 0 : index
    %c0_4 = arith.constant 0 : index
    %6 = vector.load %arg2[%c0_3, %c0_4] : memref<24x2xf32, #tpu.memory_space<vmem>>, vector<24x2xf32>
    %7 = vector.extract_strided_slice %6 {offsets = [0, 0], sizes = [24, 1], strides = [1, 1]} : vector<24x2xf32> to vector<24x1xf32>
    %8 = vector.extract_strided_slice %6 {offsets = [0, 1], sizes = [24, 1], strides = [1, 1]} : vector<24x2xf32> to vector<24x1xf32>
    %9 = tpu.iota {dimensions = array<i32: 1>} : vector<1x128xi32>
    %c20_i32 = arith.constant 20 : i32
    %10 = vector.broadcast %c20_i32 : i32 to vector<1x128xi32>
    %11 = arith.cmpi slt, %9, %10 : vector<1x128xi32>
    %12 = vector.shape_cast %11 : vector<1x128xi1> to vector<1x128xi1>
    %13 = vector.broadcast %12 : vector<1x128xi1> to vector<24x128xi1>
    %14 = vector.shape_cast %7 : vector<24x1xf32> to vector<24x1xf32>
    %15 = vector.broadcast %14 : vector<24x1xf32> to vector<24x128xf32>
    %16 = vector.shape_cast %8 : vector<24x1xf32> to vector<24x1xf32>
    %17 = vector.broadcast %16 : vector<24x1xf32> to vector<24x128xf32>
    %18 = arith.select %13, %15, %17 : vector<24x128xi1>, vector<24x128xf32>
    %c0_5 = arith.constant 0 : index
    %c0_6 = arith.constant 0 : index
    %19 = vector.load %arg3[%c0_5, %c0_6] : memref<1x128xf32, #tpu.memory_space<vmem>>, vector<1x128xf32>
    %20 = vector.broadcast %19 : vector<1x128xf32> to vector<24x128xf32>
    %21 = arith.subf %18, %20 : vector<24x128xf32>
    %22 = arith.mulf %21, %21 : vector<24x128xf32>
    %cst_7 = arith.constant 0.000000e+00 : f32
    %23 = arith.subf %cst_7, %3 : f32
    %24 = vector.broadcast %23 : f32 to vector<24x128xf32>
    %25 = arith.mulf %22, %24 : vector<24x128xf32>
    %26 = math.exp %25 : vector<24x128xf32>
    %cst_8 = arith.constant 1.000000e+00 : f32
    %27 = vector.broadcast %cst_8 : f32 to vector<1x128xf32>
    %28 = vector.broadcast %5 : f32 to vector<1x128xf32>
    %29 = arith.select %11, %27, %28 : vector<1x128xi1>, vector<1x128xf32>
    %30 = vector.broadcast %29 : vector<1x128xf32> to vector<24x128xf32>
    %31 = arith.mulf %26, %30 : vector<24x128xf32>
    %32 = arith.truncf %31 : vector<24x128xf32> to vector<24x128xbf16>
    %33 = arith.extf %32 : vector<24x128xbf16> to vector<24x128xf32>
    %34 = arith.subf %31, %33 : vector<24x128xf32>
    %35 = arith.truncf %34 : vector<24x128xf32> to vector<24x128xbf16>
    %c0_9 = arith.constant 0 : index
    %c0_10 = arith.constant 0 : index
    %36 = vector.load %arg4[%c0_9, %c0_10] : memref<128x512xbf16, #tpu.memory_space<vmem>>, vector<128x512xbf16>
    %c0_11 = arith.constant 0 : index
    %c0_12 = arith.constant 0 : index
    %37 = vector.load %arg5[%c0_11, %c0_12] : memref<128x512xbf16, #tpu.memory_space<vmem>>, vector<128x512xbf16>
    %cst_13 = arith.constant dense<0.000000e+00> : vector<24x512xf32>
    %38 = tpu.matmul %32, %36, %cst_13 {dimension_numbers = #tpu.dot_dimension_numbers<[1], [0], [0], [1], [0, 0, 1, 1], [], []>} : vector<24x128xbf16>, vector<128x512xbf16>, vector<24x512xf32> -> vector<24x512xf32>
    %cst_14 = arith.constant dense<0.000000e+00> : vector<24x512xf32>
    %39 = tpu.matmul %35, %36, %cst_14 {dimension_numbers = #tpu.dot_dimension_numbers<[1], [0], [0], [1], [0, 0, 1, 1], [], []>} : vector<24x128xbf16>, vector<128x512xbf16>, vector<24x512xf32> -> vector<24x512xf32>
    %40 = arith.addf %38, %39 : vector<24x512xf32>
    %cst_15 = arith.constant dense<0.000000e+00> : vector<24x512xf32>
    %41 = tpu.matmul %32, %37, %cst_15 {dimension_numbers = #tpu.dot_dimension_numbers<[1], [0], [0], [1], [0, 0, 1, 1], [], []>} : vector<24x128xbf16>, vector<128x512xbf16>, vector<24x512xf32> -> vector<24x512xf32>
    %cst_16 = arith.constant dense<0.000000e+00> : vector<24x512xf32>
    %42 = tpu.matmul %35, %37, %cst_16 {dimension_numbers = #tpu.dot_dimension_numbers<[1], [0], [0], [1], [0, 0, 1, 1], [], []>} : vector<24x128xbf16>, vector<128x512xbf16>, vector<24x512xf32> -> vector<24x512xf32>
    %43 = arith.addf %41, %42 : vector<24x512xf32>
    %44 = arith.mulf %40, %43 : vector<24x512xf32>
    %c0_17 = arith.constant 0 : index
    %c0_18 = arith.constant 0 : index
    %45 = vector.load %arg6[%c0_17, %c0_18] : memref<24x512xf32, #tpu.memory_space<vmem>>, vector<24x512xf32>
    tpu.vector_store %arg6[%c0_17, %c0_18], %44 {strides = array<i32>} : memref<24x512xf32, #tpu.memory_space<vmem>>, vector<24x512xf32>,
    return
  }
  func.func @transform_0(%arg0: i32) -> i32 {
    %c0_i32 = arith.constant 0 : i32
    %c0_i32_0 = arith.constant 0 : i32
    return %c0_i32 : i32
  }
  func.func @transform_1(%arg0: i32) -> (i32, i32) {
    %c0_i32 = arith.constant 0 : i32
    %c0_i32_0 = arith.constant 0 : i32
    return %arg0, %c0_i32 : i32, i32
  }
  func.func @transform_2(%arg0: i32) -> (i32, i32) {
    %c0_i32 = arith.constant 0 : i32
    %c0_i32_0 = arith.constant 0 : i32
    %c0_i32_1 = arith.constant 0 : i32
    return %c0_i32, %c0_i32_0 : i32, i32
  }
  func.func @transform_3(%arg0: i32) -> (i32, i32) {
    %c0_i32 = arith.constant 0 : i32
    %c0_i32_0 = arith.constant 0 : i32
    %c0_i32_1 = arith.constant 0 : i32
    return %c0_i32, %c0_i32_0 : i32, i32
  }
  func.func @transform_4(%arg0: i32) -> (i32, i32) {
    %c0_i32 = arith.constant 0 : i32
    %c0_i32_0 = arith.constant 0 : i32
    %c0_i32_1 = arith.constant 0 : i32
    return %c0_i32, %c0_i32_0 : i32, i32
  }
  func.func @transform_5(%arg0: i32) -> (i32, i32) {
    %c0_i32 = arith.constant 0 : i32
    %c0_i32_0 = arith.constant 0 : i32
    return %arg0, %c0_i32 : i32, i32
  }
}

</mosaic_0001>

<llo_original>
// kernel: tpu_custom_call.1
$region0: #{tpu_custom_call.1}
  #allocation0 [shape = 'u32[]', space=smem, size = 0x4, offset = 0x4, fixed_abs, tag = 'smem constant byte address 0x4 - core index']
  #allocation1 [shape = 'u32[72,128]{1,0:T(1,128)}', space=vmem, size = 0x9000, scoped, tag = 'internal scratch']
  #allocation2 [shape = 'f32[1]{0:T(128)S(6)}', space=smem, size = 0x200, scoped, tag = 'scoped memory for tpu_custom_call.1']
  %s0 = inlined_call_operand.<no memory space> [shape: f32[1], index: 0, kind: input, shape index: {}]
  %s1 = inlined_call_operand.vmem [shape: f32[24,2], index: 1, kind: input, shape index: {}]
  %s2 = inlined_call_operand.vmem [shape: f32[1,128], index: 2, kind: input, shape index: {}]
  %s3 = inlined_call_operand.hbm [shape: bf16[128,512], index: 3, kind: input, shape index: {}]
  %s4 = inlined_call_operand.hbm [shape: bf16[128,512], index: 4, kind: input, shape index: {}]
  %s5 = inlined_call_operand.hbm [shape: f32[24,512], index: 5, kind: output, shape index: {}]
  %s6 = sld [smem:[#allocation0]]
  $region38: #{tpu_custom_call.1} parent=0
    _
  %s8 = ssub.s32 1, %s6
  %s9 = scalar_select 0, %s8, %s6
  %10 = sst [smem:[#allocation2]] %s0
  $region1: #{tpu_custom_call.1} parent=0
    #allocation3 [shape = 'u8[131072]{0}', space=vmem, size = 0x20000, scoped, tag = 'input window, operand 3, single buffered']
    #allocation4 [shape = 's32[1]{0}', space=sflag, size = 0x4, scoped, tag = 'scoped memory for tpu_custom_call.1']
    #allocation5 [shape = 's32[1]{0}', space=sflag, size = 0x4, scoped, tag = 'scoped memory for tpu_custom_call.1']
    #allocation6 [shape = 'u8[131072]{0}', space=vmem, size = 0x20000, scoped, tag = 'input window, operand 4, single buffered']
    #allocation7 [shape = 's32[1]{0}', space=sflag, size = 0x4, scoped, tag = 'scoped memory for tpu_custom_call.1']
    #allocation8 [shape = 'u8[49152]{0}', space=vmem, size = 0xc000, scoped, tag = 'output window, operand 0, single buffered']
    %11 = vsyncpa [#allocation4], 0
    %12 = vsyncpa [#allocation7], 0
    %13 = vsyncpa [#allocation5], 0
    // Predicated region
    $region2: #{tpu_custom_call.1} parent=1 // pred_check
      _
    $region3: #{tpu_custom_call.1} parent=1 // pred_check_branch
      %15 = sbr.rel (0) target = $region5
    $region4: #{tpu_custom_call.1} parent=1 // pred_region
      _
    $region5: #{tpu_custom_call.1} parent=1 // pred_fallthru
      _
    // Predicated region
    $region6: #{tpu_custom_call.1} parent=1 // pred_check
      _
    $region7: #{tpu_custom_call.1} parent=1 // pred_check_branch
      %17 = sbr.rel (0) target = $region9
    $region8: #{tpu_custom_call.1} parent=1 // pred_region
      _
    $region9: #{tpu_custom_call.1} parent=1 // pred_fallthru
      _
    // Predicated region
    $region10: #{tpu_custom_call.1} parent=1 // pred_check
      _
    $region11: #{tpu_custom_call.1} parent=1 // pred_check_branch
      %19 = sbr.rel (0) target = $region13
    $region12: #{tpu_custom_call.1} parent=1 // pred_region
      _
    $region13: #{tpu_custom_call.1} parent=1 // pred_fallthru
      _
    // Predicated region
    $region14: #{tpu_custom_call.1} parent=1 // pred_check
      _
    $region15: #{tpu_custom_call.1} parent=1 // pred_check_branch
      %21 = sbr.rel (0) target = $region17
    $region16: #{tpu_custom_call.1} parent=1 // pred_region
      %23 = vsyncadd [#allocation4], 0
      %s24 = sshll.u32 %s3, 4
      %s25 = int_to_ptr.hbm [resolvable:$true] %s24
      %s26 = sshll.u32 [#allocation3], 4
      %s27 = int_to_ptr.vmem [resolvable:$true] %s26
      %32 = dma.hbm_to_vmem [thread:$0]  %s25, 4096, %s27, [#allocation4], 256, 256, 16
    $region17: #{tpu_custom_call.1} parent=1 // pred_fallthru
      _
    // Predicated region
    $region18: #{tpu_custom_call.1} parent=1 // pred_check
      _
    $region19: #{tpu_custom_call.1} parent=1 // pred_check_branch
      %34 = sbr.rel (0) target = $region21
    $region20: #{tpu_custom_call.1} parent=1 // pred_region
      %36 = vsyncadd [#allocation7], 0
      %s37 = sshll.u32 %s4, 4
      %s38 = int_to_ptr.hbm [resolvable:$true] %s37
      %s39 = sshll.u32 [#allocation6], 4
      %s40 = int_to_ptr.vmem [resolvable:$true] %s39
      %45 = dma.hbm_to_vmem [thread:$0]  %s38, 4096, %s40, [#allocation7], 256, 256, 16
    $region21: #{tpu_custom_call.1} parent=1 // pred_fallthru
      _
    // Predicated region
    $region22: #{tpu_custom_call.1} parent=1 // pred_check
      _
    $region23: #{tpu_custom_call.1} parent=1 // pred_check_branch
      %47 = sbr.rel (0) target = $region25
    $region24: #{tpu_custom_call.1} parent=1 // pred_region
      %49 = dma.done [#allocation4], 4096
    $region25: #{tpu_custom_call.1} parent=1 // pred_fallthru
      _
    // Predicated region
    $region26: #{tpu_custom_call.1} parent=1 // pred_check
      _
    $region27: #{tpu_custom_call.1} parent=1 // pred_check_branch
      %51 = sbr.rel (0) target = $region29
    $region28: #{tpu_custom_call.1} parent=1 // pred_region
      %53 = dma.done [#allocation7], 4096
    $region29: #{tpu_custom_call.1} parent=1 // pred_fallthru
      _
    %s54 = sld [smem:[#allocation2]]
    %s55 = smul.f32 %s54, %s54
    %s56 = smul.f32 %s55, 2.0
    %v57 = vstv %s56
    %v58 = vrcp.pop %v57
    %v59 = vmul.f32 %v57, %v58
    %v60 = vsub.f32 1.0, %v59
    %v61 = vmul.f32 %v58, %v60
    %v62 = vadd.f32 %v58, %v61
    %vm63 = vweird.f32 %v57
    %vm64 = vweird.f32 %v58
    %vm65 = vmor %vm63, %vm64
    %v66 = vsel %vm65, %v58, %v62
    %v67 = vand.u32 2147483647, %v57
    %vm68 = vcmp.eq.f32.partialorder %v67, 8.507059e+37
    %v69 = vand.u32 %v57, 2147483648
    %v70 = vor.u32 1.1754944e-38, %v69
    %v71 = vsel %vm68, %v70, %v66
    %s72 = vtos %v71
    %s73 = smul.f32 %s55, 6.2831855
    %v74 = vstv %s73
    %v75 = vrcp.pop %v74
    %v76 = vmul.f32 %v74, %v75
    %v77 = vsub.f32 1.0, %v76
    %v78 = vmul.f32 %v75, %v77
    %v79 = vadd.f32 %v75, %v78
    %vm80 = vweird.f32 %v74
    %vm81 = vweird.f32 %v75
    %vm82 = vmor %vm80, %vm81
    %v83 = vsel %vm82, %v75, %v79
    %v84 = vand.u32 2147483647, %v74
    %vm85 = vcmp.eq.f32.partialorder %v84, 8.507059e+37
    %v86 = vand.u32 %v74, 2147483648
    %v87 = vor.u32 1.1754944e-38, %v86
    %v88 = vsel %vm85, %v87, %v83
    %s89 = vtos %v88
    %v90 = vld [vmem:[%s1] sm:$0xff]
    %v91 = vld [vmem:[%s1 + $0x8] sm:$0xff]
    %v92 = vld [vmem:[%s1 + $0x10] sm:$0xff]
    %v93 = vlaneseq
    %v94 = vand.u32 %v93, 127
    %vm95 = vcmp.lt.s32.totalorder %v94, 20
    %v96 = vsel %vm95, 1, 0
    %vm97 = vcmp.eq.s32.totalorder %v96, 1
    %99 = vset.pattern.permute.xlu0 0
    %100 = vperm.xlu0 %99, %v90
    %v101 = vpop.permute.xlu0 %100
    %104 = vset.pattern.permute.xlu0 0
    %105 = vperm.xlu0 %104, %v91
    %v106 = vpop.permute.xlu0 %105
    %109 = vset.pattern.permute.xlu0 0
    %110 = vperm.xlu0 %109, %v92
    %v111 = vpop.permute.xlu0 %110
    %113 = vset.pattern.permute.xlu0 1
    %114 = vperm.xlu0 %113, %v90
    %v115 = vpop.permute.xlu0 %114
    %117 = vset.pattern.permute.xlu0 1
    %118 = vperm.xlu0 %117, %v91
    %v119 = vpop.permute.xlu0 %118
    %121 = vset.pattern.permute.xlu0 1
    %122 = vperm.xlu0 %121, %v92
    %v123 = vpop.permute.xlu0 %122
    %v125 = vsel %vm97, %v101, %v115
    %v126 = vsel %vm97, %v106, %v119
    %v127 = vsel %vm97, %v111, %v123
    %v128 = vld [vmem:[%s2] sm:$0x1]
    %v130 = vperm.slane %v128, 0
    %v132 = vsub.f32 %v125, %v130
    %v133 = vsub.f32 %v126, %v130
    %v134 = vsub.f32 %v127, %v130
    %v135 = vmul.f32 %v132, %v132
    %v136 = vmul.f32 %v133, %v133
    %v137 = vmul.f32 %v134, %v134
    %s138 = ssub.f32 0.0, %s72
    %v139 = vstv %s138
    %v140 = vmul.f32 %v135, %v139
    %v141 = vmul.f32 %v136, %v139
    %v142 = vmul.f32 %v137, %v139
    %v143 = vmul.f32 %v140, 1.442695
    %v144 = vpow.pop %v143
    %v145 = vmul.f32 %v141, 1.442695
    %v146 = vpow.pop %v145
    %v147 = vmul.f32 %v142, 1.442695
    %v148 = vpow.pop %v147
    %v149 = vstv %s89
    %v150 = vsel %vm95, 1.0, %v149
    %v151 = vmul.f32 %v144, %v150
    %v152 = vmul.f32 %v146, %v150
    %v153 = vmul.f32 %v148, %v150
    %v154 = vpack.c.bf16 %v151, %v151
    %v155 = vpack.c.bf16 %v152, %v152
    %v156 = vpack.c.bf16 %v153, %v153
    %v157 = vunpack.c.l.bf16 %v154
    %v158 = vunpack.c.l.bf16 %v155
    %v159 = vunpack.c.l.bf16 %v156
    %v160 = vsub.f32 %v151, %v157
    %v161 = vsub.f32 %v152, %v158
    %v162 = vsub.f32 %v153, %v159
    %v163 = vpack.c.bf16 %v161, %v160
    %v164 = vpack.c.bf16 %v162, %v162
    %v165 = vld [vmem:[#allocation3] sm:$0xff]
    %v166 = vld [vmem:[#allocation3 + $0x8] sm:$0xff]
    %v167 = vld [vmem:[#allocation3 + $0x10] sm:$0xff]
    %v168 = vld [vmem:[#allocation3 + $0x18] sm:$0xff]
    %v169 = vld [vmem:[#allocation3 + $0x20] sm:$0xff]
    %v170 = vld [vmem:[#allocation3 + $0x28] sm:$0xff]
    %v171 = vld [vmem:[#allocation3 + $0x30] sm:$0xff]
    %v172 = vld [vmem:[#allocation3 + $0x38] sm:$0xff]
    %v173 = vld [vmem:[#allocation3 + $0x40] sm:$0xff]
    %v174 = vld [vmem:[#allocation3 + $0x48] sm:$0xff]
    %v175 = vld [vmem:[#allocation3 + $0x50] sm:$0xff]
    %v176 = vld [vmem:[#allocation3 + $0x58] sm:$0xff]
    %v177 = vld [vmem:[#allocation3 + $0x60] sm:$0xff]
    %v178 = vld [vmem:[#allocation3 + $0x68] sm:$0xff]
    %v179 = vld [vmem:[#allocation3 + $0x70] sm:$0xff]
    %v180 = vld [vmem:[#allocation3 + $0x78] sm:$0xff]
    %v181 = vld [vmem:[#allocation3 + $0x80] sm:$0xff]
    %v182 = vld [vmem:[#allocation3 + $0x88] sm:$0xff]
    %v183 = vld [vmem:[#allocation3 + $0x90] sm:$0xff]
    %v184 = vld [vmem:[#allocation3 + $0x98] sm:$0xff]
    %v185 = vld [vmem:[#allocation3 + $0xa0] sm:$0xff]
    %v186 = vld [vmem:[#allocation3 + $0xa8] sm:$0xff]
    %v187 = vld [vmem:[#allocation3 + $0xb0] sm:$0xff]
    %v188 = vld [vmem:[#allocation3 + $0xb8] sm:$0xff]
    %v189 = vld [vmem:[#allocation3 + $0xc0] sm:$0xff]
    %v190 = vld [vmem:[#allocation3 + $0xc8] sm:$0xff]
    %v191 = vld [vmem:[#allocation3 + $0xd0] sm:$0xff]
    %v192 = vld [vmem:[#allocation3 + $0xd8] sm:$0xff]
    %v193 = vld [vmem:[#allocation3 + $0xe0] sm:$0xff]
    %v194 = vld [vmem:[#allocation3 + $0xe8] sm:$0xff]
    %v195 = vld [vmem:[#allocation3 + $0xf0] sm:$0xff]
    %v196 = vld [vmem:[#allocation3 + $0xf8] sm:$0xff]
    %v197 = vld [vmem:[#allocation6] sm:$0xff]
    %v198 = vld [vmem:[#allocation6 + $0x8] sm:$0xff]
    %v199 = vld [vmem:[#allocation6 + $0x10] sm:$0xff]
    %v200 = vld [vmem:[#allocation6 + $0x18] sm:$0xff]
    %v201 = vld [vmem:[#allocation6 + $0x20] sm:$0xff]
    %v202 = vld [vmem:[#allocation6 + $0x28] sm:$0xff]
    %v203 = vld [vmem:[#allocation6 + $0x30] sm:$0xff]
    %v204 = vld [vmem:[#allocation6 + $0x38] sm:$0xff]
    %v205 = vld [vmem:[#allocation6 + $0x40] sm:$0xff]
    %v206 = vld [vmem:[#allocation6 + $0x48] sm:$0xff]
    %v207 = vld [vmem:[#allocation6 + $0x50] sm:$0xff]
    %v208 = vld [vmem:[#allocation6 + $0x58] sm:$0xff]
    %v209 = vld [vmem:[#allocation6 + $0x60] sm:$0xff]
    %v210 = vld [vmem:[#allocation6 + $0x68] sm:$0xff]
    %v211 = vld [vmem:[#allocation6 + $0x70] sm:$0xff]
    %v212 = vld [vmem:[#allocation6 + $0x78] sm:$0xff]
    %v213 = vld [vmem:[#allocation6 + $0x80] sm:$0xff]
    %v214 = vld [vmem:[#allocation6 + $0x88] sm:$0xff]
    %v215 = vld [vmem:[#allocation6 + $0x90] sm:$0xff]
    %v216 = vld [vmem:[#allocation6 + $0x98] sm:$0xff]
    %v217 = vld [vmem:[#allocation6 + $0xa0] sm:$0xff]
    %v218 = vld [vmem:[#allocation6 + $0xa8] sm:$0xff]
    %v219 = vld [vmem:[#allocation6 + $0xb0] sm:$0xff]
    %v220 = vld [vmem:[#allocation6 + $0xb8] sm:$0xff]
    %v221 = vld [vmem:[#allocation6 + $0xc0] sm:$0xff]
    %v222 = vld [vmem:[#allocation6 + $0xc8] sm:$0xff]
    %v223 = vld [vmem:[#allocation6 + $0xd0] sm:$0xff]
    %v224 = vld [vmem:[#allocation6 + $0xd8] sm:$0xff]
    %v225 = vld [vmem:[#allocation6 + $0xe0] sm:$0xff]
    %v226 = vld [vmem:[#allocation6 + $0xe8] sm:$0xff]
    %v227 = vld [vmem:[#allocation6 + $0xf0] sm:$0xff]
    %v228 = vld [vmem:[#allocation6 + $0xf8] sm:$0xff]
    %v261 = vunpack.c.l.b16 %v165
    %v262 = vunpack.c.h.b16 %v165
    %v263 = vunpack.c.l.b16 %v166
    %v264 = vunpack.c.h.b16 %v166
    %v265 = vunpack.c.l.b16 %v167
    %v266 = vunpack.c.h.b16 %v167
    %v267 = vunpack.c.l.b16 %v168
    %v268 = vunpack.c.h.b16 %v168
    %v269 = vunpack.c.l.b16 %v169
    %v270 = vunpack.c.h.b16 %v169
    %v271 = vunpack.c.l.b16 %v170
    %v272 = vunpack.c.h.b16 %v170
    %v273 = vunpack.c.l.b16 %v171
    %v274 = vunpack.c.h.b16 %v171
    %v275 = vunpack.c.l.b16 %v172
    %v276 = vunpack.c.h.b16 %v172
    %v277 = vunpack.c.l.b16 %v173
    %v278 = vunpack.c.h.b16 %v173
    %v279 = vunpack.c.l.b16 %v174
    %v280 = vunpack.c.h.b16 %v174
    %v281 = vunpack.c.l.b16 %v175
    %v282 = vunpack.c.h.b16 %v175
    %v283 = vunpack.c.l.b16 %v176
    %v284 = vunpack.c.h.b16 %v176
    %v285 = vunpack.c.l.b16 %v177
    %v286 = vunpack.c.h.b16 %v177
    %v287 = vunpack.c.l.b16 %v178
    %v288 = vunpack.c.h.b16 %v178
    %v289 = vunpack.c.l.b16 %v179
    %v290 = vunpack.c.h.b16 %v179
    %v291 = vunpack.c.l.b16 %v180
    %v292 = vunpack.c.h.b16 %v180
    %v293 = vunpack.c.l.b16 %v181
    %v294 = vunpack.c.h.b16 %v181
    %v295 = vunpack.c.l.b16 %v182
    %v296 = vunpack.c.h.b16 %v182
    %v297 = vunpack.c.l.b16 %v183
    %v298 = vunpack.c.h.b16 %v183
    %v299 = vunpack.c.l.b16 %v184
    %v300 = vunpack.c.h.b16 %v184
    %v301 = vunpack.c.l.b16 %v185
    %v302 = vunpack.c.h.b16 %v185
    %v303 = vunpack.c.l.b16 %v186
    %v304 = vunpack.c.h.b16 %v186
    %v305 = vunpack.c.l.b16 %v187
    %v306 = vunpack.c.h.b16 %v187
    %v307 = vunpack.c.l.b16 %v188
    %v308 = vunpack.c.h.b16 %v188
    %v309 = vunpack.c.l.b16 %v189
    %v310 = vunpack.c.h.b16 %v189
    %v311 = vunpack.c.l.b16 %v190
    %v312 = vunpack.c.h.b16 %v190
    %v313 = vunpack.c.l.b16 %v191
    %v314 = vunpack.c.h.b16 %v191
    %v315 = vunpack.c.l.b16 %v192
    %v316 = vunpack.c.h.b16 %v192
    %v317 = vunpack.c.l.b16 %v193
    %v318 = vunpack.c.h.b16 %v193
    %v319 = vunpack.c.l.b16 %v194
    %v320 = vunpack.c.h.b16 %v194
    %v321 = vunpack.c.l.b16 %v195
    %v322 = vunpack.c.h.b16 %v195
    %v323 = vunpack.c.l.b16 %v196
    %v324 = vunpack.c.h.b16 %v196
    %v325 = vpack.c.b16 %v265, %v261
    %v326 = vpack.c.b16 %v266, %v262
    %v327 = vpack.c.b16 %v267, %v263
    %v328 = vpack.c.b16 %v268, %v264
    %v329 = vpack.c.b16 %v273, %v269
    %v330 = vpack.c.b16 %v274, %v270
    %v331 = vpack.c.b16 %v275, %v271
    %v332 = vpack.c.b16 %v276, %v272
    %v333 = vpack.c.b16 %v281, %v277
    %v334 = vpack.c.b16 %v282, %v278
    %v335 = vpack.c.b16 %v283, %v279
    %v336 = vpack.c.b16 %v284, %v280
    %v337 = vpack.c.b16 %v289, %v285
    %v338 = vpack.c.b16 %v290, %v286
    %v339 = vpack.c.b16 %v291, %v287
    %v340 = vpack.c.b16 %v292, %v288
    %v341 = vpack.c.b16 %v297, %v293
    %v342 = vpack.c.b16 %v298, %v294
    %v343 = vpack.c.b16 %v299, %v295
    %v344 = vpack.c.b16 %v300, %v296
    %v345 = vpack.c.b16 %v305, %v301
    %v346 = vpack.c.b16 %v306, %v302
    %v347 = vpack.c.b16 %v307, %v303
    %v348 = vpack.c.b16 %v308, %v304
    %v349 = vpack.c.b16 %v313, %v309
    %v350 = vpack.c.b16 %v314, %v310
    %v351 = vpack.c.b16 %v315, %v311
    %v352 = vpack.c.b16 %v316, %v312
    %v353 = vpack.c.b16 %v321, %v317
    %v354 = vpack.c.b16 %v322, %v318
    %v355 = vpack.c.b16 %v323, %v319
    %v356 = vpack.c.b16 %v324, %v320
    %389 = vmatpush.bf16.msra.mxu0 %v353
    %390 = vmatpush.bf16.msra.mxu0 %v349
    %391 = vmatpush.bf16.msra.mxu0 %v345
    %392 = vmatpush.bf16.msra.mxu0 %v341
    %393 = vmatpush.bf16.msra.mxu0 %v337
    %394 = vmatpush.bf16.msra.mxu0 %v333
    %395 = vmatpush.bf16.msra.mxu0 %v329
    %396 = vmatpush.bf16.msra.mxu0 %v325
    %397 = vmatmul.bf16.gmra.mxu0 %v163
    %v398 = vpop.f32.mrf.mxu0
    %v399 = vadd.f32 0.0, %v398
    %v400 = vpop.f32.mrf.mxu0
    %v401 = vadd.f32 0.0, %v400
    %402 = vmatmul.bf16.gmra.mxu0 %v164
    %v403 = vpop.f32.mrf.mxu0
    %v404 = vadd.f32 0.0, %v403
    %v405 = vpop.f32.mrf.mxu0
    %406 = vdwg.mxu0
    %407 = vmatpush.bf16.msra.mxu0 %v354
    %408 = vmatpush.bf16.msra.mxu0 %v350
    %409 = vmatpush.bf16.msra.mxu0 %v346
    %410 = vmatpush.bf16.msra.mxu0 %v342
    %411 = vmatpush.bf16.msra.mxu0 %v338
    %412 = vmatpush.bf16.msra.mxu0 %v334
    %413 = vmatpush.bf16.msra.mxu0 %v330
    %414 = vmatpush.bf16.msra.mxu0 %v326
    %415 = vmatmul.bf16.gmra.mxu0 %v163
    %v416 = vpop.f32.mrf.mxu0
    %v417 = vadd.f32 0.0, %v416
    %v418 = vpop.f32.mrf.mxu0
    %v419 = vadd.f32 0.0, %v418
    %420 = vmatmul.bf16.gmra.mxu0 %v164
    %v421 = vpop.f32.mrf.mxu0
    %v422 = vadd.f32 0.0, %v421
    %v423 = vpop.f32.mrf.mxu0
    %424 = vdwg.mxu0
    %425 = vmatpush.bf16.msra.mxu0 %v355
    %426 = vmatpush.bf16.msra.mxu0 %v351
    %427 = vmatpush.bf16.msra.mxu0 %v347
    %428 = vmatpush.bf16.msra.mxu0 %v343
    %429 = vmatpush.bf16.msra.mxu0 %v339
    %430 = vmatpush.bf16.msra.mxu0 %v335
    %431 = vmatpush.bf16.msra.mxu0 %v331
    %432 = vmatpush.bf16.msra.mxu0 %v327
    %433 = vmatmul.bf16.gmra.mxu0 %v163
    %v434 = vpop.f32.mrf.mxu0
    %v435 = vadd.f32 0.0, %v434
    %v436 = vpop.f32.mrf.mxu0
    %v437 = vadd.f32 0.0, %v436
    %438 = vmatmul.bf16.gmra.mxu0 %v164
    %v439 = vpop.f32.mrf.mxu0
    %v440 = vadd.f32 0.0, %v439
    %v441 = vpop.f32.mrf.mxu0
    %442 = vdwg.mxu0
    %443 = vmatpush.bf16.msra.mxu0 %v356
    %444 = vmatpush.bf16.msra.mxu0 %v352
    %445 = vmatpush.bf16.msra.mxu0 %v348
    %446 = vmatpush.bf16.msra.mxu0 %v344
    %447 = vmatpush.bf16.msra.mxu0 %v340
    %448 = vmatpush.bf16.msra.mxu0 %v336
    %449 = vmatpush.bf16.msra.mxu0 %v332
    %450 = vmatpush.bf16.msra.mxu0 %v328
    %451 = vmatmul.bf16.gmra.mxu0 %v163
    %v452 = vpop.f32.mrf.mxu0
    %v453 = vadd.f32 0.0, %v452
    %v454 = vpop.f32.mrf.mxu0
    %v455 = vadd.f32 0.0, %v454
    %456 = vmatmul.bf16.gmra.mxu0 %v164
    %v457 = vpop.f32.mrf.mxu0
    %v458 = vadd.f32 0.0, %v457
    %v459 = vpop.f32.mrf.mxu0
    %460 = vdwg.mxu0
    %v464 = vunpack.c.l.b16 %v154
    %v465 = vunpack.c.l.b16 %v155
    %v466 = vunpack.c.l.b16 %v156
    %v467 = vpack.c.b16 %v465, %v464
    %v468 = vpack.c.b16 %v466, %v466
    %471 = vmatpush.bf16.msra.mxu0 %v353
    %472 = vmatpush.bf16.msra.mxu0 %v349
    %473 = vmatpush.bf16.msra.mxu0 %v345
    %474 = vmatpush.bf16.msra.mxu0 %v341
    %475 = vmatpush.bf16.msra.mxu0 %v337
    %476 = vmatpush.bf16.msra.mxu0 %v333
    %477 = vmatpush.bf16.msra.mxu0 %v329
    %478 = vmatpush.bf16.msra.mxu0 %v325
    %479 = vmatmul.bf16.gmra.mxu0 %v467
    %v480 = vpop.f32.mrf.mxu0
    %v481 = vadd.f32 %v399, %v480
    %v482 = vpop.f32.mrf.mxu0
    %v483 = vadd.f32 %v401, %v482
    %484 = vmatmul.bf16.gmra.mxu0 %v468
    %v485 = vpop.f32.mrf.mxu0
    %v486 = vadd.f32 %v404, %v485
    %v487 = vpop.f32.mrf.mxu0
    %488 = vdwg.mxu0
    %489 = vmatpush.bf16.msra.mxu0 %v354
    %490 = vmatpush.bf16.msra.mxu0 %v350
    %491 = vmatpush.bf16.msra.mxu0 %v346
    %492 = vmatpush.bf16.msra.mxu0 %v342
    %493 = vmatpush.bf16.msra.mxu0 %v338
    %494 = vmatpush.bf16.msra.mxu0 %v334
    %495 = vmatpush.bf16.msra.mxu0 %v330
    %496 = vmatpush.bf16.msra.mxu0 %v326
    %497 = vmatmul.bf16.gmra.mxu0 %v467
    %v498 = vpop.f32.mrf.mxu0
    %v499 = vadd.f32 %v417, %v498
    %v500 = vpop.f32.mrf.mxu0
    %v501 = vadd.f32 %v419, %v500
    %502 = vmatmul.bf16.gmra.mxu0 %v468
    %v503 = vpop.f32.mrf.mxu0
    %v504 = vadd.f32 %v422, %v503
    %v505 = vpop.f32.mrf.mxu0
    %506 = vdwg.mxu0
    %507 = vmatpush.bf16.msra.mxu0 %v355
    %508 = vmatpush.bf16.msra.mxu0 %v351
    %509 = vmatpush.bf16.msra.mxu0 %v347
    %510 = vmatpush.bf16.msra.mxu0 %v343
    %511 = vmatpush.bf16.msra.mxu0 %v339
    %512 = vmatpush.bf16.msra.mxu0 %v335
    %513 = vmatpush.bf16.msra.mxu0 %v331
    %514 = vmatpush.bf16.msra.mxu0 %v327
    %515 = vmatmul.bf16.gmra.mxu0 %v467
    %v516 = vpop.f32.mrf.mxu0
    %v517 = vadd.f32 %v435, %v516
    %v518 = vpop.f32.mrf.mxu0
    %v519 = vadd.f32 %v437, %v518
    %520 = vmatmul.bf16.gmra.mxu0 %v468
    %v521 = vpop.f32.mrf.mxu0
    %v522 = vadd.f32 %v440, %v521
    %v523 = vpop.f32.mrf.mxu0
    %524 = vdwg.mxu0
    %525 = vmatpush.bf16.msra.mxu0 %v356
    %526 = vmatpush.bf16.msra.mxu0 %v352
    %527 = vmatpush.bf16.msra.mxu0 %v348
    %528 = vmatpush.bf16.msra.mxu0 %v344
    %529 = vmatpush.bf16.msra.mxu0 %v340
    %530 = vmatpush.bf16.msra.mxu0 %v336
    %531 = vmatpush.bf16.msra.mxu0 %v332
    %532 = vmatpush.bf16.msra.mxu0 %v328
    %533 = vmatmul.bf16.gmra.mxu0 %v467
    %v534 = vpop.f32.mrf.mxu0
    %v535 = vadd.f32 %v453, %v534
    %v536 = vpop.f32.mrf.mxu0
    %v537 = vadd.f32 %v455, %v536
    %538 = vmatmul.bf16.gmra.mxu0 %v468
    %v539 = vpop.f32.mrf.mxu0
    %v540 = vadd.f32 %v458, %v539
    %v541 = vpop.f32.mrf.mxu0
    %542 = vdwg.mxu0
    %v575 = vunpack.c.l.b16 %v197
    %v576 = vunpack.c.h.b16 %v197
    %v577 = vunpack.c.l.b16 %v198
    %v578 = vunpack.c.h.b16 %v198
    %v579 = vunpack.c.l.b16 %v199
    %v580 = vunpack.c.h.b16 %v199
    %v581 = vunpack.c.l.b16 %v200
    %v582 = vunpack.c.h.b16 %v200
    %v583 = vunpack.c.l.b16 %v201
    %v584 = vunpack.c.h.b16 %v201
    %v585 = vunpack.c.l.b16 %v202
    %v586 = vunpack.c.h.b16 %v202
    %v587 = vunpack.c.l.b16 %v203
    %v588 = vunpack.c.h.b16 %v203
    %v589 = vunpack.c.l.b16 %v204
    %v590 = vunpack.c.h.b16 %v204
    %v591 = vunpack.c.l.b16 %v205
    %v592 = vunpack.c.h.b16 %v205
    %v593 = vunpack.c.l.b16 %v206
    %v594 = vunpack.c.h.b16 %v206
    %v595 = vunpack.c.l.b16 %v207
    %v596 = vunpack.c.h.b16 %v207
    %v597 = vunpack.c.l.b16 %v208
    %v598 = vunpack.c.h.b16 %v208
    %v599 = vunpack.c.l.b16 %v209
    %v600 = vunpack.c.h.b16 %v209
    %v601 = vunpack.c.l.b16 %v210
    %v602 = vunpack.c.h.b16 %v210
    %v603 = vunpack.c.l.b16 %v211
    %v604 = vunpack.c.h.b16 %v211
    %v605 = vunpack.c.l.b16 %v212
    %v606 = vunpack.c.h.b16 %v212
    %v607 = vunpack.c.l.b16 %v213
    %v608 = vunpack.c.h.b16 %v213
    %v609 = vunpack.c.l.b16 %v214
    %v610 = vunpack.c.h.b16 %v214
    %v611 = vunpack.c.l.b16 %v215
    %v612 = vunpack.c.h.b16 %v215
    %v613 = vunpack.c.l.b16 %v216
    %v614 = vunpack.c.h.b16 %v216
    %v615 = vunpack.c.l.b16 %v217
    %v616 = vunpack.c.h.b16 %v217
    %v617 = vunpack.c.l.b16 %v218
    %v618 = vunpack.c.h.b16 %v218
    %v619 = vunpack.c.l.b16 %v219
    %v620 = vunpack.c.h.b16 %v219
    %v621 = vunpack.c.l.b16 %v220
    %v622 = vunpack.c.h.b16 %v220
    %v623 = vunpack.c.l.b16 %v221
    %v624 = vunpack.c.h.b16 %v221
    %v625 = vunpack.c.l.b16 %v222
    %v626 = vunpack.c.h.b16 %v222
    %v627 = vunpack.c.l.b16 %v223
    %v628 = vunpack.c.h.b16 %v223
    %v629 = vunpack.c.l.b16 %v224
    %v630 = vunpack.c.h.b16 %v224
    %v631 = vunpack.c.l.b16 %v225
    %v632 = vunpack.c.h.b16 %v225
    %v633 = vunpack.c.l.b16 %v226
    %v634 = vunpack.c.h.b16 %v226
    %v635 = vunpack.c.l.b16 %v227
    %v636 = vunpack.c.h.b16 %v227
    %v637 = vunpack.c.l.b16 %v228
    %v638 = vunpack.c.h.b16 %v228
    %v639 = vpack.c.b16 %v579, %v575
    %v640 = vpack.c.b16 %v580, %v576
    %v641 = vpack.c.b16 %v581, %v577
    %v642 = vpack.c.b16 %v582, %v578
    %v643 = vpack.c.b16 %v587, %v583
    %v644 = vpack.c.b16 %v588, %v584
    %v645 = vpack.c.b16 %v589, %v585
    %v646 = vpack.c.b16 %v590, %v586
    %v647 = vpack.c.b16 %v595, %v591
    %v648 = vpack.c.b16 %v596, %v592
    %v649 = vpack.c.b16 %v597, %v593
    %v650 = vpack.c.b16 %v598, %v594
    %v651 = vpack.c.b16 %v603, %v599
    %v652 = vpack.c.b16 %v604, %v600
    %v653 = vpack.c.b16 %v605, %v601
    %v654 = vpack.c.b16 %v606, %v602
    %v655 = vpack.c.b16 %v611, %v607
    %v656 = vpack.c.b16 %v612, %v608
    %v657 = vpack.c.b16 %v613, %v609
    %v658 = vpack.c.b16 %v614, %v610
    %v659 = vpack.c.b16 %v619, %v615
    %v660 = vpack.c.b16 %v620, %v616
    %v661 = vpack.c.b16 %v621, %v617
    %v662 = vpack.c.b16 %v622, %v618
    %v663 = vpack.c.b16 %v627, %v623
    %v664 = vpack.c.b16 %v628, %v624
    %v665 = vpack.c.b16 %v629, %v625
    %v666 = vpack.c.b16 %v630, %v626
    %v667 = vpack.c.b16 %v635, %v631
    %v668 = vpack.c.b16 %v636, %v632
    %v669 = vpack.c.b16 %v637, %v633
    %v670 = vpack.c.b16 %v638, %v634
    %703 = vmatpush.bf16.msra.mxu0 %v667
    %704 = vmatpush.bf16.msra.mxu0 %v663
    %705 = vmatpush.bf16.msra.mxu0 %v659
    %706 = vmatpush.bf16.msra.mxu0 %v655
    %707 = vmatpush.bf16.msra.mxu0 %v651
    %708 = vmatpush.bf16.msra.mxu0 %v647
    %709 = vmatpush.bf16.msra.mxu0 %v643
    %710 = vmatpush.bf16.msra.mxu0 %v639
    %711 = vmatmul.bf16.gmra.mxu0 %v163
    %v712 = vpop.f32.mrf.mxu0
    %v713 = vadd.f32 0.0, %v712
    %v714 = vpop.f32.mrf.mxu0
    %v715 = vadd.f32 0.0, %v714
    %716 = vmatmul.bf16.gmra.mxu0 %v164
    %v717 = vpop.f32.mrf.mxu0
    %v718 = vadd.f32 0.0, %v717
    %v719 = vpop.f32.mrf.mxu0
    %720 = vdwg.mxu0
    %721 = vmatpush.bf16.msra.mxu0 %v668
    %722 = vmatpush.bf16.msra.mxu0 %v664
    %723 = vmatpush.bf16.msra.mxu0 %v660
    %724 = vmatpush.bf16.msra.mxu0 %v656
    %725 = vmatpush.bf16.msra.mxu0 %v652
    %726 = vmatpush.bf16.msra.mxu0 %v648
    %727 = vmatpush.bf16.msra.mxu0 %v644
    %728 = vmatpush.bf16.msra.mxu0 %v640
    %729 = vmatmul.bf16.gmra.mxu0 %v163
    %v730 = vpop.f32.mrf.mxu0
    %v731 = vadd.f32 0.0, %v730
    %v732 = vpop.f32.mrf.mxu0
    %v733 = vadd.f32 0.0, %v732
    %734 = vmatmul.bf16.gmra.mxu0 %v164
    %v735 = vpop.f32.mrf.mxu0
    %v736 = vadd.f32 0.0, %v735
    %v737 = vpop.f32.mrf.mxu0
    %738 = vdwg.mxu0
    %739 = vmatpush.bf16.msra.mxu0 %v669
    %740 = vmatpush.bf16.msra.mxu0 %v665
    %741 = vmatpush.bf16.msra.mxu0 %v661
    %742 = vmatpush.bf16.msra.mxu0 %v657
    %743 = vmatpush.bf16.msra.mxu0 %v653
    %744 = vmatpush.bf16.msra.mxu0 %v649
    %745 = vmatpush.bf16.msra.mxu0 %v645
    %746 = vmatpush.bf16.msra.mxu0 %v641
    %747 = vmatmul.bf16.gmra.mxu0 %v163
    %v748 = vpop.f32.mrf.mxu0
    %v749 = vadd.f32 0.0, %v748
    %v750 = vpop.f32.mrf.mxu0
    %v751 = vadd.f32 0.0, %v750
    %752 = vmatmul.bf16.gmra.mxu0 %v164
    %v753 = vpop.f32.mrf.mxu0
    %v754 = vadd.f32 0.0, %v753
    %v755 = vpop.f32.mrf.mxu0
    %756 = vdwg.mxu0
    %757 = vmatpush.bf16.msra.mxu0 %v670
    %758 = vmatpush.bf16.msra.mxu0 %v666
    %759 = vmatpush.bf16.msra.mxu0 %v662
    %760 = vmatpush.bf16.msra.mxu0 %v658
    %761 = vmatpush.bf16.msra.mxu0 %v654
    %762 = vmatpush.bf16.msra.mxu0 %v650
    %763 = vmatpush.bf16.msra.mxu0 %v646
    %764 = vmatpush.bf16.msra.mxu0 %v642
    %765 = vmatmul.bf16.gmra.mxu0 %v163
    %v766 = vpop.f32.mrf.mxu0
    %v767 = vadd.f32 0.0, %v766
    %v768 = vpop.f32.mrf.mxu0
    %v769 = vadd.f32 0.0, %v768
    %770 = vmatmul.bf16.gmra.mxu0 %v164
    %v771 = vpop.f32.mrf.mxu0
    %v772 = vadd.f32 0.0, %v771
    %v773 = vpop.f32.mrf.mxu0
    %774 = vdwg.mxu0
    %775 = vmatpush.bf16.msra.mxu0 %v667
    %776 = vmatpush.bf16.msra.mxu0 %v663
    %777 = vmatpush.bf16.msra.mxu0 %v659
    %778 = vmatpush.bf16.msra.mxu0 %v655
    %779 = vmatpush.bf16.msra.mxu0 %v651
    %780 = vmatpush.bf16.msra.mxu0 %v647
    %781 = vmatpush.bf16.msra.mxu0 %v643
    %782 = vmatpush.bf16.msra.mxu0 %v639
    %783 = vmatmul.bf16.gmra.mxu0 %v467
    %v784 = vpop.f32.mrf.mxu0
    %v785 = vadd.f32 %v713, %v784
    %v786 = vpop.f32.mrf.mxu0
    %v787 = vadd.f32 %v715, %v786
    %788 = vmatmul.bf16.gmra.mxu0 %v468
    %v789 = vpop.f32.mrf.mxu0
    %v790 = vadd.f32 %v718, %v789
    %v791 = vpop.f32.mrf.mxu0
    %792 = vdwg.mxu0
    %793 = vmatpush.bf16.msra.mxu0 %v668
    %794 = vmatpush.bf16.msra.mxu0 %v664
    %795 = vmatpush.bf16.msra.mxu0 %v660
    %796 = vmatpush.bf16.msra.mxu0 %v656
    %797 = vmatpush.bf16.msra.mxu0 %v652
    %798 = vmatpush.bf16.msra.mxu0 %v648
    %799 = vmatpush.bf16.msra.mxu0 %v644
    %800 = vmatpush.bf16.msra.mxu0 %v640
    %801 = vmatmul.bf16.gmra.mxu0 %v467
    %v802 = vpop.f32.mrf.mxu0
    %v803 = vadd.f32 %v731, %v802
    %v804 = vpop.f32.mrf.mxu0
    %v805 = vadd.f32 %v733, %v804
    %806 = vmatmul.bf16.gmra.mxu0 %v468
    %v807 = vpop.f32.mrf.mxu0
    %v808 = vadd.f32 %v736, %v807
    %v809 = vpop.f32.mrf.mxu0
    %810 = vdwg.mxu0
    %811 = vmatpush.bf16.msra.mxu0 %v669
    %812 = vmatpush.bf16.msra.mxu0 %v665
    %813 = vmatpush.bf16.msra.mxu0 %v661
    %814 = vmatpush.bf16.msra.mxu0 %v657
    %815 = vmatpush.bf16.msra.mxu0 %v653
    %816 = vmatpush.bf16.msra.mxu0 %v649
    %817 = vmatpush.bf16.msra.mxu0 %v645
    %818 = vmatpush.bf16.msra.mxu0 %v641
    %819 = vmatmul.bf16.gmra.mxu0 %v467
    %v820 = vpop.f32.mrf.mxu0
    %v821 = vadd.f32 %v749, %v820
    %v822 = vpop.f32.mrf.mxu0
    %v823 = vadd.f32 %v751, %v822
    %824 = vmatmul.bf16.gmra.mxu0 %v468
    %v825 = vpop.f32.mrf.mxu0
    %v826 = vadd.f32 %v754, %v825
    %v827 = vpop.f32.mrf.mxu0
    %828 = vdwg.mxu0
    %829 = vmatpush.bf16.msra.mxu0 %v670
    %830 = vmatpush.bf16.msra.mxu0 %v666
    %831 = vmatpush.bf16.msra.mxu0 %v662
    %832 = vmatpush.bf16.msra.mxu0 %v658
    %833 = vmatpush.bf16.msra.mxu0 %v654
    %834 = vmatpush.bf16.msra.mxu0 %v650
    %835 = vmatpush.bf16.msra.mxu0 %v646
    %836 = vmatpush.bf16.msra.mxu0 %v642
    %837 = vmatmul.bf16.gmra.mxu0 %v467
    %v838 = vpop.f32.mrf.mxu0
    %v839 = vadd.f32 %v767, %v838
    %v840 = vpop.f32.mrf.mxu0
    %v841 = vadd.f32 %v769, %v840
    %842 = vmatmul.bf16.gmra.mxu0 %v468
    %v843 = vpop.f32.mrf.mxu0
    %v844 = vadd.f32 %v772, %v843
    %v845 = vpop.f32.mrf.mxu0
    %846 = vdwg.mxu0
    %v847 = vmul.f32 %v481, %v785
    %v848 = vmul.f32 %v499, %v803
    %v849 = vmul.f32 %v517, %v821
    %v850 = vmul.f32 %v535, %v839
    %v851 = vmul.f32 %v483, %v787
    %v852 = vmul.f32 %v501, %v805
    %v853 = vmul.f32 %v519, %v823
    %v854 = vmul.f32 %v537, %v841
    %v855 = vmul.f32 %v486, %v790
    %v856 = vmul.f32 %v504, %v808
    %v857 = vmul.f32 %v522, %v826
    %v858 = vmul.f32 %v540, %v844
    %859 = vst [vmem:[#allocation8] sm:$0xff] %v847
    %860 = vst [vmem:[#allocation8 + $0x8] sm:$0xff] %v848
    %861 = vst [vmem:[#allocation8 + $0x10] sm:$0xff] %v849
    %862 = vst [vmem:[#allocation8 + $0x18] sm:$0xff] %v850
    %863 = vst [vmem:[#allocation8 + $0x20] sm:$0xff] %v851
    %864 = vst [vmem:[#allocation8 + $0x28] sm:$0xff] %v852
    %865 = vst [vmem:[#allocation8 + $0x30] sm:$0xff] %v853
    %866 = vst [vmem:[#allocation8 + $0x38] sm:$0xff] %v854
    %867 = vst [vmem:[#allocation8 + $0x40] sm:$0xff] %v855
    %868 = vst [vmem:[#allocation8 + $0x48] sm:$0xff] %v856
    %869 = vst [vmem:[#allocation8 + $0x50] sm:$0xff] %v857
    %870 = vst [vmem:[#allocation8 + $0x58] sm:$0xff] %v858
    // Predicated region
    $region30: #{tpu_custom_call.1} parent=1 // pred_check
      _
    $region31: #{tpu_custom_call.1} parent=1 // pred_check_branch
      %872 = sbr.rel (0) target = $region33
    $region32: #{tpu_custom_call.1} parent=1 // pred_region
      %874 = vsyncadd [#allocation5], 0
      %s875 = sshll.u32 [#allocation8], 4
      %s876 = int_to_ptr.vmem [resolvable:$true] %s875
      %s877 = sshll.u32 %s5, 4
      %s878 = int_to_ptr.hbm [resolvable:$true] %s877
      %883 = dma.vmem_to_hbm [thread:$0]  %s876, 1536, %s878, [#allocation5], 512, 512, 32
    $region33: #{tpu_custom_call.1} parent=1 // pred_fallthru
      _
    // Predicated region
    $region34: #{tpu_custom_call.1} parent=1 // pred_check
      _
    $region35: #{tpu_custom_call.1} parent=1 // pred_check_branch
      %885 = sbr.rel (0) target = $region37
    $region36: #{tpu_custom_call.1} parent=1 // pred_region
      %887 = dma.done [#allocation5], 1536
    $region37: #{tpu_custom_call.1} parent=1 // pred_fallthru
      _
    %888 = vsyncpa [#allocation4], 1
    %889 = vsyncpa [#allocation7], 1
    %890 = vsyncpa [#allocation5], 1

</llo_original>
